<compile_context>
chip_gen: v7x
topology: tpu7x:2x2x1
jax: 0.10.0
libtpu: 0.0.40
codegen_flags: <defaults>
</compile_context>

<pallas_src>
import functools
import math

import jax
import jax.numpy as jnp
from jax import lax
from jax.experimental import pallas as pl
from jax.experimental.pallas import tpu as pltpu

LANE = 128
_LOG_SQRT_2PI = 0.5 * math.log(2.0 * math.pi)


def acnet_kernel(x_ref, w_ref, b_ref, out_ref, *, act_start, act_end, logp_col):
    xb = x_ref[...]                      # (TB, P) bf16 slab: [state | noise | 0]

    w1 = w_ref[0]                        # (P, P) bf16  layer-1 [actor | critic]
    w2 = w_ref[1]                        # (P, P) bf16  layer-2 block-diagonal
    w3 = w_ref[2]                        # (P, P) bf16  heads (action / value cols)
    b1 = b_ref[0:1, :]                   # (1, P) f32
    b2 = b_ref[1:2, :]
    b3 = b_ref[2:3, :]                   # logp constant C folded in at logp_col
    scale = b_ref[3:4, :]                # softplus(std) on action lanes, 0 else
    neg_half = b_ref[4:5, :]             # -0.5 on action lanes, 0 else

    # --- 3 fused bf16 MXU passes, f32 accumulation (actor + critic together) ---
    h = jnp.maximum(jnp.dot(xb, w1, preferred_element_type=jnp.float32) + b1, 0.0)
    h = jnp.maximum(
        jnp.dot(h.astype(jnp.bfloat16), w2, preferred_element_type=jnp.float32) + b2,
        0.0)
    z = jnp.dot(h.astype(jnp.bfloat16), w3, preferred_element_type=jnp.float32) + b3

    col = lax.broadcasted_iota(jnp.int32, (1, z.shape[-1]), 1)
    amask = jnp.logical_and(col >= act_start, col < act_end)

    # tanh only on the action-mean columns; value / logp columns pass through.
    mean_or_val = jnp.where(amask, jnp.tanh(z), z)

    # Action lanes of the input slab hold the N(0,1) noise; `scale` is zero on
    # every other lane, so this add only touches the action columns.
    xf = xb.astype(jnp.float32)
    slab = mean_or_val + scale * xf

    # log_prob: (action - mean) == scale*noise exactly, so the Gaussian term is
    # -0.5*noise^2; the -log(scale) - log(sqrt(2pi)) constant is baked into b3.
    logp = jnp.sum(neg_half * xf * xf, axis=-1, keepdims=True)      # (TB, 1)

    # Lane-dense output slab: [pad | action | logp | value | 0...] (unmasked vst)
    out_ref[...] = slab + jnp.where(col == logp_col, logp, 0.0)


def _round_up(x, m):
    return ((x + m - 1) // m) * m


def _pick_batch_tile(B):
    """Return (batch_tile, padded_batch).

    Big tiles (per-grid-step overhead ~0.35us dominates small tiles); for large
    batches guarantee >= 2 grid steps so the "parallel" axis shards across both
    TensorCores on v7x. B is padded up to a tile multiple (never tiny tiles).
    """
    bp = _round_up(B, 8)
    if bp <= 512:
        return bp, bp                       # single step, whole batch in VMEM
    tb = min(2048, _round_up((bp + 1) // 2, 8))
    bp = _round_up(bp, tb)
    return tb, bp


def acnet_forward(x, noise, packed):
    """Full ACNetwork forward in one Pallas call; returns (action, log_prob, value)."""
    w_stack = packed["w"]                   # (3, P, P) bf16
    b_stack = packed["b"]                   # (8, P)    f32
    D = packed["input_dim"]
    A = packed["action_dim"]
    a0, lcol, vcol = packed["a0"], packed["lcol"], packed["vcol"]
    B = x.shape[0]
    P = w_stack.shape[-1]

    tb, b_pad = _pick_batch_tile(B)
    grid = (b_pad // tb,)

    # Fused bf16 input slab [state | noise | 0]: one DMA stream, half the bytes.
    # TODO(synk): in a real rollout loop, produce this padded slab directly at
    # the source instead of concatenate+pad here (saves one HBM round trip).
    slab = jnp.concatenate([x, noise], axis=-1).astype(jnp.bfloat16)
    slab = jnp.pad(slab, ((0, b_pad - B), (0, P - (D + A))))

    out = pl.pallas_call(
        functools.partial(acnet_kernel, act_start=a0, act_end=a0 + A, logp_col=lcol),
        out_shape=jax.ShapeDtypeStruct((b_pad, P), jnp.float32),
        grid_spec=pltpu.PrefetchScalarGridSpec(
            num_scalar_prefetch=0,
            grid=grid,
            in_specs=[
                pl.BlockSpec((tb, P), lambda i: (i, 0)),       # fused x|noise tile
                pl.BlockSpec((3, P, P), lambda i: (0, 0, 0)),  # weights (resident)
                pl.BlockSpec((8, P), lambda i: (0, 0)),        # biases/scale (resident)
            ],
            out_specs=pl.BlockSpec((tb, P), lambda i: (i, 0)),
        ),
        compiler_params=pltpu.CompilerParams(
            dimension_semantics=("parallel",)),
    )(slab, w_stack, b_stack)

    action = out[:B, a0:a0 + A]
    log_prob = out[:B, lcol:lcol + 1]
    value = out[:B, vcol:vcol + 1]
    return action, log_prob, value


def init_params(key, input_dim, action_dim, hidden_dim):
    """Deterministic init mimicking nn.Linear's U(-1/sqrt(fan_in), 1/sqrt(fan_in)).

    Weights stored as (fan_in, fan_out), biases/std as (1, feature).
    """
    def linear(k, fan_in, fan_out):
        kw, kb = jax.random.split(k)
        bound = 1.0 / math.sqrt(fan_in)
        w = jax.random.uniform(kw, (fan_in, fan_out), jnp.float32, -bound, bound)
        b = jax.random.uniform(kb, (1, fan_out), jnp.float32, -bound, bound)
        return w, b

    keys = jax.random.split(key, 6)
    w1a, b1a = linear(keys[0], input_dim, hidden_dim)
    w2a, b2a = linear(keys[1], hidden_dim, hidden_dim)
    w3a, b3a = linear(keys[2], hidden_dim, action_dim)
    w1c, b1c = linear(keys[3], input_dim, hidden_dim)
    w2c, b2c = linear(keys[4], hidden_dim, hidden_dim)
    w3c, b3c = linear(keys[5], hidden_dim, 1)
    std = jnp.zeros((1, action_dim), jnp.float32)   # nn.Parameter(torch.zeros(A))
    return dict(
        w1a=w1a, b1a=b1a, w2a=w2a, b2a=b2a, w3a=w3a, b3a=b3a,
        w1c=w1c, b1c=b1c, w2c=w2c, b2c=b2c, w3c=w3c, b3c=b3c,
        std=std,
    )


def pack_params(p, input_dim, action_dim, hidden_dim, lane=LANE):
    """Pack the 13 small parameter tensors into one bf16 weight stack + one f32
    bias/scale stack, with softplus/log constants precomputed on the host."""
    H, A, D, P = hidden_dim, action_dim, input_dim, lane
    assert 2 * H <= P and D + A + 2 <= P and D <= P
    a0 = D                 # first action column of the output slab
    lcol = D + A           # log_prob column
    vcol = D + A + 1       # value column

    w1 = jnp.zeros((P, P), jnp.float32)
    w1 = w1.at[:D, :H].set(p["w1a"]).at[:D, H:2 * H].set(p["w1c"])

    w2 = jnp.zeros((P, P), jnp.float32)
    w2 = w2.at[:H, :H].set(p["w2a"]).at[H:2 * H, H:2 * H].set(p["w2c"])

    w3 = jnp.zeros((P, P), jnp.float32)
    w3 = w3.at[:H, a0:a0 + A].set(p["w3a"]).at[H:2 * H, vcol:vcol + 1].set(p["w3c"])

    # Host-side precompute: scale = softplus(std), logp constant C.
    scale_a = jax.nn.softplus(p["std"][0])                       # (A,)
    logp_const = -jnp.sum(jnp.log(scale_a)) - A * _LOG_SQRT_2PI  # scalar

    b1 = jnp.zeros((P,), jnp.float32).at[:H].set(p["b1a"][0]).at[H:2 * H].set(p["b1c"][0])
    b2 = jnp.zeros((P,), jnp.float32).at[:H].set(p["b2a"][0]).at[H:2 * H].set(p["b2c"][0])
    b3 = (jnp.zeros((P,), jnp.float32)
          .at[a0:a0 + A].set(p["b3a"][0])
          .at[vcol].set(p["b3c"][0, 0])
          .at[lcol].set(logp_const))
    scale_row = jnp.zeros((P,), jnp.float32).at[a0:a0 + A].set(scale_a)
    neg_half_row = jnp.zeros((P,), jnp.float32).at[a0:a0 + A].set(-0.5)
    zero = jnp.zeros((P,), jnp.float32)

    return {
        "w": jnp.stack([w1, w2, w3]).astype(jnp.bfloat16),   # (3, P, P), one DMA
        "b": jnp.stack([b1, b2, b3, scale_row, neg_half_row, zero, zero, zero]),
        "input_dim": D, "action_dim": A, "a0": a0, "lcol": lcol, "vcol": vcol,
    }


def acnet_forward_ref(x, noise, p):
    """Pure-JAX f32 reference matching the torch module's math."""
    h = jnp.maximum(x @ p["w1a"] + p["b1a"], 0.0)
    h = jnp.maximum(h @ p["w2a"] + p["b2a"], 0.0)
    mean = jnp.tanh(h @ p["w3a"] + p["b3a"])
    c = jnp.maximum(x @ p["w1c"] + p["b1c"], 0.0)
    c = jnp.maximum(c @ p["w2c"] + p["b2c"], 0.0)
    value = c @ p["w3c"] + p["b3c"]
    scale = jax.nn.softplus(p["std"])
    action = mean + scale * noise
    logp = (
        -((action - mean) ** 2) / (2.0 * scale ** 2)
        - jnp.log(scale)
        - _LOG_SQRT_2PI
    ).sum(-1, keepdims=True)
    return action, logp, value


def acnet_forward_ref_bf16(x, noise, p):
    """Reference mirroring the kernel's bf16-operand / f32-accumulate matmuls."""
    bf = jnp.bfloat16

    def mm(a, w):
        return jnp.dot(a.astype(bf), w.astype(bf), preferred_element_type=jnp.float32)

    xb = x.astype(bf)
    nb = noise.astype(bf).astype(jnp.float32)
    h = jnp.maximum(mm(xb, p["w1a"]) + p["b1a"], 0.0)
    h = jnp.maximum(mm(h, p["w2a"]) + p["b2a"], 0.0)
    mean = jnp.tanh(mm(h, p["w3a"]) + p["b3a"])
    c = jnp.maximum(mm(xb, p["w1c"]) + p["b1c"], 0.0)
    c = jnp.maximum(mm(c, p["w2c"]) + p["b2c"], 0.0)
    value = mm(c, p["w3c"]) + p["b3c"]
    scale = jax.nn.softplus(p["std"])
    action = mean + scale * nb
    logp = (-0.5 * nb * nb - jnp.log(scale) - _LOG_SQRT_2PI).sum(-1, keepdims=True)
    return action, logp, value


if __name__ == "__main__":
    B, INPUT_DIM, ACTION_DIM, HIDDEN_DIM = 4, 8, 4, 32

    key = jax.random.PRNGKey(0)
    k_params, k_x, k_noise = jax.random.split(key, 3)

    params = init_params(k_params, INPUT_DIM, ACTION_DIM, HIDDEN_DIM)
    packed = pack_params(params, INPUT_DIM, ACTION_DIM, HIDDEN_DIM)

    x = jax.random.normal(k_x, (B, INPUT_DIM), jnp.float32)
    noise = jax.random.normal(k_noise, (B, ACTION_DIM), jnp.float32)

    action, log_prob, value = jax.block_until_ready(acnet_forward(x, noise, packed))

    assert action.shape == (B, ACTION_DIM)
    assert log_prob.shape == (B, 1)
    assert value.shape == (B, 1)

    # Tight check vs a reference that mirrors the kernel's bf16 operand rounding.
    a_b, lp_b, v_b = acnet_forward_ref_bf16(x, noise, params)
    assert jnp.allclose(action, a_b, atol=1e-2), "action mismatch (bf16 ref)"
    assert jnp.allclose(log_prob, lp_b, atol=1e-2), "log_prob mismatch (bf16 ref)"
    assert jnp.allclose(value, v_b, atol=1e-2), "value mismatch (bf16 ref)"

    # Semantic check vs the exact-f32 torch-equivalent math (bf16 MXU tolerance).
    a_ref, lp_ref, v_ref = acnet_forward_ref(x, noise, params)
    assert jnp.allclose(action, a_ref, atol=1e-1), "action mismatch (f32 ref)"
    assert jnp.allclose(log_prob, lp_ref, atol=1e-1), "log_prob mismatch (f32 ref)"
    assert jnp.allclose(value, v_ref, atol=1e-1), "value mismatch (f32 ref)"

    print("KERNEL_OK")
</pallas_src>

<mosaic_0001>
module attributes {stable_mosaic.version = 11 : i64} {
  func.func @acnet_kernel(%arg0: i32, %arg1: memref<8x128xbf16, #tpu.memory_space<vmem>>, %arg2: memref<3x128x128xbf16, #tpu.memory_space<vmem>>, %arg3: memref<8x128xf32, #tpu.memory_space<vmem>>, %arg4: memref<8x128xf32, #tpu.memory_space<vmem>>) attributes {dimension_semantics = [#tpu.dimension_semantics<parallel>], iteration_bounds = array<i64: 1>, scalar_prefetch = 0 : i64, scratch_operands = 0 : i64, tpu.core_type = #tpu.core_type<tc>, window_params = [{transform_indices = @transform_0, window_bounds = array<i64: 8, 128>}, {pipeline_mode = #tpu.pipeline_mode<synchronous>, transform_indices = @transform_1, window_bounds = array<i64: 3, 128, 128>}, {pipeline_mode = #tpu.pipeline_mode<synchronous>, transform_indices = @transform_2, window_bounds = array<i64: 8, 128>}, {transform_indices = @transform_3, window_bounds = array<i64: 8, 128>}]} {
    %c0 = arith.constant 0 : index
    %c0_0 = arith.constant 0 : index
    %0 = vector.load %arg1[%c0, %c0_0] : memref<8x128xbf16, #tpu.memory_space<vmem>>, vector<8x128xbf16>
    %c0_1 = arith.constant 0 : index
    %c0_2 = arith.constant 0 : index
    %c0_3 = arith.constant 0 : index
    %1 = vector.load %arg2[%c0_1, %c0_2, %c0_3] : memref<3x128x128xbf16, #tpu.memory_space<vmem>>, vector<1x128x128xbf16>
    %2 = vector.shape_cast %1 : vector<1x128x128xbf16> to vector<128x128xbf16>
    %c1 = arith.constant 1 : index
    %c0_4 = arith.constant 0 : index
    %c0_5 = arith.constant 0 : index
    %3 = vector.load %arg2[%c1, %c0_4, %c0_5] : memref<3x128x128xbf16, #tpu.memory_space<vmem>>, vector<1x128x128xbf16>
    %4 = vector.shape_cast %3 : vector<1x128x128xbf16> to vector<128x128xbf16>
    %c2 = arith.constant 2 : index
    %c0_6 = arith.constant 0 : index
    %c0_7 = arith.constant 0 : index
    %5 = vector.load %arg2[%c2, %c0_6, %c0_7] : memref<3x128x128xbf16, #tpu.memory_space<vmem>>, vector<1x128x128xbf16>
    %6 = vector.shape_cast %5 : vector<1x128x128xbf16> to vector<128x128xbf16>
    %c0_8 = arith.constant 0 : index
    %c0_9 = arith.constant 0 : index
    %7 = vector.load %arg3[%c0_8, %c0_9] : memref<8x128xf32, #tpu.memory_space<vmem>>, vector<1x128xf32>
    %c1_10 = arith.constant 1 : index
    %c0_11 = arith.constant 0 : index
    %8 = vector.load %arg3[%c1_10, %c0_11] : memref<8x128xf32, #tpu.memory_space<vmem>>, vector<1x128xf32>
    %c2_12 = arith.constant 2 : index
    %c0_13 = arith.constant 0 : index
    %9 = vector.load %arg3[%c2_12, %c0_13] : memref<8x128xf32, #tpu.memory_space<vmem>>, vector<1x128xf32>
    %c3 = arith.constant 3 : index
    %c0_14 = arith.constant 0 : index
    %10 = vector.load %arg3[%c3, %c0_14] : memref<8x128xf32, #tpu.memory_space<vmem>>, vector<1x128xf32>
    %c4 = arith.constant 4 : index
    %c0_15 = arith.constant 0 : index
    %11 = vector.load %arg3[%c4, %c0_15] : memref<8x128xf32, #tpu.memory_space<vmem>>, vector<1x128xf32>
    %cst = arith.constant dense<0.000000e+00> : vector<8x128xf32>
    %12 = tpu.matmul %0, %2, %cst {dimension_numbers = #tpu.dot_dimension_numbers<[1], [0], [0], [1], [0, 0, 1, 1], [], []>} : vector<8x128xbf16>, vector<128x128xbf16>, vector<8x128xf32> -> vector<8x128xf32>
    %13 = vector.broadcast %7 : vector<1x128xf32> to vector<8x128xf32>
    %14 = arith.addf %12, %13 : vector<8x128xf32>
    %cst_16 = arith.constant 0.000000e+00 : f32
    %15 = vector.broadcast %cst_16 : f32 to vector<8x128xf32>
    %16 = arith.maximumf %14, %15 : vector<8x128xf32>
    %17 = arith.truncf %16 : vector<8x128xf32> to vector<8x128xbf16>
    %cst_17 = arith.constant dense<0.000000e+00> : vector<8x128xf32>
    %18 = tpu.matmul %17, %4, %cst_17 {dimension_numbers = #tpu.dot_dimension_numbers<[1], [0], [0], [1], [0, 0, 1, 1], [], []>} : vector<8x128xbf16>, vector<128x128xbf16>, vector<8x128xf32> -> vector<8x128xf32>
    %19 = vector.broadcast %8 : vector<1x128xf32> to vector<8x128xf32>
    %20 = arith.addf %18, %19 : vector<8x128xf32>
    %cst_18 = arith.constant 0.000000e+00 : f32
    %21 = vector.broadcast %cst_18 : f32 to vector<8x128xf32>
    %22 = arith.maximumf %20, %21 : vector<8x128xf32>
    %23 = arith.truncf %22 : vector<8x128xf32> to vector<8x128xbf16>
    %cst_19 = arith.constant dense<0.000000e+00> : vector<8x128xf32>
    %24 = tpu.matmul %23, %6, %cst_19 {dimension_numbers = #tpu.dot_dimension_numbers<[1], [0], [0], [1], [0, 0, 1, 1], [], []>} : vector<8x128xbf16>, vector<128x128xbf16>, vector<8x128xf32> -> vector<8x128xf32>
    %25 = vector.broadcast %9 : vector<1x128xf32> to vector<8x128xf32>
    %26 = arith.addf %24, %25 : vector<8x128xf32>
    %27 = tpu.iota {dimensions = array<i32: 1>} : vector<1x128xi32>
    %c8_i32 = arith.constant 8 : i32
    %28 = vector.broadcast %c8_i32 : i32 to vector<1x128xi32>
    %29 = arith.cmpi sge, %27, %28 : vector<1x128xi32>
    %c12_i32 = arith.constant 12 : i32
    %30 = vector.broadcast %c12_i32 : i32 to vector<1x128xi32>
    %31 = arith.cmpi slt, %27, %30 : vector<1x128xi32>
    %32 = arith.andi %29, %31 : vector<1x128xi1>
    %33 = math.tanh %26 : vector<8x128xf32>
    %34 = vector.shape_cast %32 : vector<1x128xi1> to vector<1x128xi1>
    %35 = vector.broadcast %34 : vector<1x128xi1> to vector<8x128xi1>
    %36 = arith.select %35, %33, %26 : vector<8x128xi1>, vector<8x128xf32>
    %37 = arith.extf %0 : vector<8x128xbf16> to vector<8x128xf32>
    %38 = vector.broadcast %10 : vector<1x128xf32> to vector<8x128xf32>
    %39 = arith.mulf %38, %37 : vector<8x128xf32>
    %40 = arith.addf %36, %39 : vector<8x128xf32>
    %41 = vector.broadcast %11 : vector<1x128xf32> to vector<8x128xf32>
    %42 = arith.mulf %41, %37 : vector<8x128xf32>
    %43 = arith.mulf %42, %37 : vector<8x128xf32>
    %cst_20 = arith.constant dense<0.000000e+00> : vector<8xf32>
    %44 = vector.multi_reduction <add>, %43, %cst_20 [1] : vector<8x128xf32> to vector<8xf32>
    %45 = vector.shape_cast %44 : vector<8xf32> to vector<8x1xf32>
    %c12_i32_21 = arith.constant 12 : i32
    %46 = vector.broadcast %c12_i32_21 : i32 to vector<1x128xi32>
    %47 = arith.cmpi eq, %27, %46 : vector<1x128xi32>
    %cst_22 = arith.constant 0.000000e+00 : f32
    %48 = vector.shape_cast %47 : vector<1x128xi1> to vector<1x128xi1>
    %49 = vector.broadcast %48 : vector<1x128xi1> to vector<8x128xi1>
    %50 = vector.shape_cast %45 : vector<8x1xf32> to vector<8x1xf32>
    %51 = vector.broadcast %50 : vector<8x1xf32> to vector<8x128xf32>
    %52 = vector.broadcast %cst_22 : f32 to vector<8x128xf32>
    %53 = arith.select %49, %51, %52 : vector<8x128xi1>, vector<8x128xf32>
    %54 = arith.addf %40, %53 : vector<8x128xf32>
    %c0_23 = arith.constant 0 : index
    %c0_24 = arith.constant 0 : index
    %55 = vector.load %arg4[%c0_23, %c0_24] : memref<8x128xf32, #tpu.memory_space<vmem>>, vector<8x128xf32>
    tpu.vector_store %arg4[%c0_23, %c0_24], %54 {strides = array<i32>} : memref<8x128xf32, #tpu.memory_space<vmem>>, vector<8x128xf32>,
    return
  }
  func.func @transform_0(%arg0: i32) -> (i32, i32) {
    %c0_i32 = arith.constant 0 : i32
    %c0_i32_0 = arith.constant 0 : i32
    return %arg0, %c0_i32 : i32, i32
  }
  func.func @transform_1(%arg0: i32) -> (i32, i32, i32) {
    %c0_i32 = arith.constant 0 : i32
    %c0_i32_0 = arith.constant 0 : i32
    %c0_i32_1 = arith.constant 0 : i32
    %c0_i32_2 = arith.constant 0 : i32
    return %c0_i32, %c0_i32_0, %c0_i32_1 : i32, i32, i32
  }
  func.func @transform_2(%arg0: i32) -> (i32, i32) {
    %c0_i32 = arith.constant 0 : i32
    %c0_i32_0 = arith.constant 0 : i32
    %c0_i32_1 = arith.constant 0 : i32
    return %c0_i32, %c0_i32_0 : i32, i32
  }
  func.func @transform_3(%arg0: i32) -> (i32, i32) {
    %c0_i32 = arith.constant 0 : i32
    %c0_i32_0 = arith.constant 0 : i32
    return %arg0, %c0_i32 : i32, i32
  }
}

</mosaic_0001>

<llo_original>
// kernel: tpu_custom_call.1
$region0: #{tpu_custom_call.1}
  #allocation0 [shape = 'u32[]', space=smem, size = 0x4, offset = 0x4, fixed_abs, tag = 'smem constant byte address 0x4 - core index']
  #allocation1 [shape = 'u32[144,128]{1,0:T(1,128)}', space=vmem, size = 0x12000, scoped, tag = 'internal scratch']
  %s0 = inlined_call_operand.hbm [shape: bf16[8,128], index: 0, kind: input, shape index: {}]
  %s1 = inlined_call_operand.hbm [shape: bf16[3,128,128], index: 1, kind: input, shape index: {}]
  %s2 = inlined_call_operand.hbm [shape: f32[8,128], index: 2, kind: input, shape index: {}]
  %s3 = inlined_call_operand.hbm [shape: f32[8,128], index: 3, kind: output, shape index: {}]
  %s4 = sld [smem:[#allocation0]]
  $region34: #{tpu_custom_call.1} parent=0
    _
  %s6 = ssub.s32 1, %s4
  %s7 = scalar_select 0, %s6, %s4
  $region1: #{tpu_custom_call.1} parent=0
    #allocation2 [shape = 'u8[2048]{0}', space=vmem, size = 0x800, scoped, tag = 'input window, operand 0, single buffered']
    #allocation3 [shape = 's32[1]{0}', space=sflag, size = 0x4, scoped, tag = 'scoped memory for tpu_custom_call.1']
    #allocation4 [shape = 's32[1]{0}', space=sflag, size = 0x4, scoped, tag = 'scoped memory for tpu_custom_call.1']
    #allocation5 [shape = 'u8[98304]{0}', space=vmem, size = 0x18000, scoped, tag = 'input window, operand 1, single buffered']
    #allocation6 [shape = 's32[1]{0}', space=sflag, size = 0x4, scoped, tag = 'scoped memory for tpu_custom_call.1']
    #allocation7 [shape = 'u8[4096]{0}', space=vmem, size = 0x1000, scoped, tag = 'input window, operand 2, single buffered']
    #allocation8 [shape = 'u8[4096]{0}', space=vmem, size = 0x1000, scoped, tag = 'output window, operand 0, single buffered']
    %8 = vsyncpa [#allocation3], 0
    %9 = vsyncpa [#allocation6], 0
    %10 = vsyncpa [#allocation4], 0
    // Predicated region
    $region2: #{tpu_custom_call.1} parent=1 // pred_check
      _
    $region3: #{tpu_custom_call.1} parent=1 // pred_check_branch
      %12 = sbr.rel (0) target = $region5
    $region4: #{tpu_custom_call.1} parent=1 // pred_region
      %s14 = ssub.s32 64, 64
      %15 = vsyncadd [#allocation3], %s14
      %s17 = sshll.u32 [#allocation2], 4
      %s18 = int_to_ptr.vmem [resolvable:$true] %s17
      %20 = dma.hbm_to_vmem [thread:$0]  %s0, 64, %s18, [#allocation3]
    $region5: #{tpu_custom_call.1} parent=1 // pred_fallthru
      _
    // Predicated region
    $region6: #{tpu_custom_call.1} parent=1 // pred_check
      _
    $region7: #{tpu_custom_call.1} parent=1 // pred_check_branch
      %22 = sbr.rel (0) target = $region9
    $region8: #{tpu_custom_call.1} parent=1 // pred_region
      %s24 = ssub.s32 3072, 3072
      %25 = vsyncadd [#allocation6], %s24
      %s26 = sshll.u32 [#allocation5], 4
      %s27 = int_to_ptr.vmem [resolvable:$true] %s26
      %32 = dma.hbm_to_vmem [thread:$0]  %s1, 3072, %s27, [#allocation6], 64, 64, 4
    $region9: #{tpu_custom_call.1} parent=1 // pred_fallthru
      _
    // Predicated region
    $region10: #{tpu_custom_call.1} parent=1 // pred_check
      _
    $region11: #{tpu_custom_call.1} parent=1 // pred_check_branch
      %34 = sbr.rel (0) target = $region13
    $region12: #{tpu_custom_call.1} parent=1 // pred_region
      %s36 = ssub.s32 128, 128
      %37 = vsyncadd [#allocation6], %s36
      %s39 = sshll.u32 [#allocation7], 4
      %s40 = int_to_ptr.vmem [resolvable:$true] %s39
      %42 = dma.hbm_to_vmem [thread:$0]  %s2, 128, %s40, [#allocation6]
    $region13: #{tpu_custom_call.1} parent=1 // pred_fallthru
      _
    // Predicated region
    $region14: #{tpu_custom_call.1} parent=1 // pred_check
      _
    $region15: #{tpu_custom_call.1} parent=1 // pred_check_branch
      %44 = sbr.rel (0) target = $region17
    $region16: #{tpu_custom_call.1} parent=1 // pred_region
      %45 = dma.done [#allocation3], 64
    $region17: #{tpu_custom_call.1} parent=1 // pred_fallthru
      _
    // Predicated region
    $region18: #{tpu_custom_call.1} parent=1 // pred_check
      _
    $region19: #{tpu_custom_call.1} parent=1 // pred_check_branch
      %47 = sbr.rel (0) target = $region21
    $region20: #{tpu_custom_call.1} parent=1 // pred_region
      %48 = dma.done [#allocation6], 3072
    $region21: #{tpu_custom_call.1} parent=1 // pred_fallthru
      _
    // Predicated region
    $region22: #{tpu_custom_call.1} parent=1 // pred_check
      _
    $region23: #{tpu_custom_call.1} parent=1 // pred_check_branch
      %50 = sbr.rel (0) target = $region25
    $region24: #{tpu_custom_call.1} parent=1 // pred_region
      %51 = dma.done [#allocation6], 128
    $region25: #{tpu_custom_call.1} parent=1 // pred_fallthru
      _
    %v53 = vld [vmem:[#allocation2] sm:$0xf]
    %v54 = vld [vmem:[#allocation5] sm:$0xf]
    %v55 = vld [vmem:[#allocation5 + $0x4] sm:$0xf]
    %v56 = vld [vmem:[#allocation5 + $0x8] sm:$0xf]
    %v57 = vld [vmem:[#allocation5 + $0xc] sm:$0xf]
    %v58 = vld [vmem:[#allocation5 + $0x10] sm:$0xf]
    %v59 = vld [vmem:[#allocation5 + $0x14] sm:$0xf]
    %v60 = vld [vmem:[#allocation5 + $0x18] sm:$0xf]
    %v61 = vld [vmem:[#allocation5 + $0x1c] sm:$0xf]
    %v62 = vld [vmem:[#allocation5 + $0x20] sm:$0xf]
    %v63 = vld [vmem:[#allocation5 + $0x24] sm:$0xf]
    %v64 = vld [vmem:[#allocation5 + $0x28] sm:$0xf]
    %v65 = vld [vmem:[#allocation5 + $0x2c] sm:$0xf]
    %v66 = vld [vmem:[#allocation5 + $0x30] sm:$0xf]
    %v67 = vld [vmem:[#allocation5 + $0x34] sm:$0xf]
    %v68 = vld [vmem:[#allocation5 + $0x38] sm:$0xf]
    %v69 = vld [vmem:[#allocation5 + $0x3c] sm:$0xf]
    %s70 = scalar_lea.vmem [#allocation5], 64
    %v71 = vld [vmem:[%s70] sm:$0xf]
    %v72 = vld [vmem:[%s70 + $0x4] sm:$0xf]
    %v73 = vld [vmem:[%s70 + $0x8] sm:$0xf]
    %v74 = vld [vmem:[%s70 + $0xc] sm:$0xf]
    %v75 = vld [vmem:[%s70 + $0x10] sm:$0xf]
    %v76 = vld [vmem:[%s70 + $0x14] sm:$0xf]
    %v77 = vld [vmem:[%s70 + $0x18] sm:$0xf]
    %v78 = vld [vmem:[%s70 + $0x1c] sm:$0xf]
    %v79 = vld [vmem:[%s70 + $0x20] sm:$0xf]
    %v80 = vld [vmem:[%s70 + $0x24] sm:$0xf]
    %v81 = vld [vmem:[%s70 + $0x28] sm:$0xf]
    %v82 = vld [vmem:[%s70 + $0x2c] sm:$0xf]
    %v83 = vld [vmem:[%s70 + $0x30] sm:$0xf]
    %v84 = vld [vmem:[%s70 + $0x34] sm:$0xf]
    %v85 = vld [vmem:[%s70 + $0x38] sm:$0xf]
    %v86 = vld [vmem:[%s70 + $0x3c] sm:$0xf]
    %s87 = scalar_lea.vmem [#allocation5], 128
    %v88 = vld [vmem:[%s87] sm:$0xf]
    %v89 = vld [vmem:[%s87 + $0x4] sm:$0xf]
    %v90 = vld [vmem:[%s87 + $0x8] sm:$0xf]
    %v91 = vld [vmem:[%s87 + $0xc] sm:$0xf]
    %v92 = vld [vmem:[%s87 + $0x10] sm:$0xf]
    %v93 = vld [vmem:[%s87 + $0x14] sm:$0xf]
    %v94 = vld [vmem:[%s87 + $0x18] sm:$0xf]
    %v95 = vld [vmem:[%s87 + $0x1c] sm:$0xf]
    %v96 = vld [vmem:[%s87 + $0x20] sm:$0xf]
    %v97 = vld [vmem:[%s87 + $0x24] sm:$0xf]
    %v98 = vld [vmem:[%s87 + $0x28] sm:$0xf]
    %v99 = vld [vmem:[%s87 + $0x2c] sm:$0xf]
    %v100 = vld [vmem:[%s87 + $0x30] sm:$0xf]
    %v101 = vld [vmem:[%s87 + $0x34] sm:$0xf]
    %v102 = vld [vmem:[%s87 + $0x38] sm:$0xf]
    %v103 = vld [vmem:[%s87 + $0x3c] sm:$0xf]
    %v104 = vld [vmem:[#allocation7] sm:$0x1]
    %v105 = vld [vmem:[#allocation7 + $0x1] sm:$0x1]
    %v106 = vld [vmem:[#allocation7 + $0x2] sm:$0x1]
    %v107 = vld [vmem:[#allocation7 + $0x3] sm:$0x1]
    %v108 = vld [vmem:[#allocation7 + $0x4] sm:$0x1]
    %v109 = vlaneseq
    %v110 = vshrl.u32 %v109, 7
    %v111 = vsub.s32 0, %v110
    %v112 = vrot.slane %v104, %v111
    %v129 = vunpack.c.l.b16 %v54
    %v130 = vunpack.c.l.b16 %v55
    %v131 = vunpack.c.l.b16 %v56
    %v132 = vunpack.c.l.b16 %v57
    %v133 = vunpack.c.l.b16 %v58
    %v134 = vunpack.c.l.b16 %v59
    %v135 = vunpack.c.l.b16 %v60
    %v136 = vunpack.c.l.b16 %v61
    %v137 = vunpack.c.l.b16 %v62
    %v138 = vunpack.c.l.b16 %v63
    %v139 = vunpack.c.l.b16 %v64
    %v140 = vunpack.c.l.b16 %v65
    %v141 = vunpack.c.l.b16 %v66
    %v142 = vunpack.c.l.b16 %v67
    %v143 = vunpack.c.l.b16 %v68
    %v144 = vunpack.c.l.b16 %v69
    %v145 = vpack.c.b16 %v130, %v129
    %v146 = vpack.c.b16 %v132, %v131
    %v147 = vpack.c.b16 %v134, %v133
    %v148 = vpack.c.b16 %v136, %v135
    %v149 = vpack.c.b16 %v138, %v137
    %v150 = vpack.c.b16 %v140, %v139
    %v151 = vpack.c.b16 %v142, %v141
    %v152 = vpack.c.b16 %v144, %v143
    %161 = vmatprep.subr.bf16.mxu0 0
    %162 = vmatpush1.bf16.msra.mxu0 %v145
    %163 = vmatprep.subr.bf16.mxu0 0
    %164 = vmatpush1.bf16.msra.mxu0 %v146
    %165 = vmatprep.subr.bf16.mxu0 0
    %166 = vmatpush1.bf16.msra.mxu0 %v147
    %167 = vmatprep.subr.bf16.mxu0 0
    %168 = vmatpush1.bf16.msra.mxu0 %v148
    %169 = vmatprep.subr.bf16.mxu0 0
    %170 = vmatpush1.bf16.msra.mxu0 %v149
    %171 = vmatprep.subr.bf16.mxu0 0
    %172 = vmatpush1.bf16.msra.mxu0 %v150
    %173 = vmatprep.subr.bf16.mxu0 0
    %174 = vmatpush1.bf16.msra.mxu0 %v151
    %175 = vmatprep.subr.bf16.mxu0 0
    %176 = vmatpush1.bf16.msra.mxu0 %v152
    %177 = vmatprep.subr.bf16.mxu0 0
    %178 = vmatpush1.bf16.msra.mxu0 0
    %179 = vmatprep.subr.bf16.mxu0 0
    %180 = vmatpush1.bf16.msra.mxu0 0
    %181 = vmatprep.subr.bf16.mxu0 0
    %182 = vmatpush1.bf16.msra.mxu0 0
    %183 = vmatprep.subr.bf16.mxu0 0
    %184 = vmatpush1.bf16.msra.mxu0 0
    %185 = vmatprep.subr.bf16.mxu0 0
    %186 = vmatpush1.bf16.msra.mxu0 0
    %187 = vmatprep.subr.bf16.mxu0 0
    %188 = vmatpush1.bf16.msra.mxu0 0
    %189 = vmatprep.subr.bf16.mxu0 0
    %190 = vmatpush1.bf16.msra.mxu0 0
    %191 = vmatprep.subr.bf16.mxu0 0
    %192 = vmatpush1.bf16.msra.mxu0 0
    %193 = vmatprep.mubr.bf16.mxu0 0
    %194 = vmatmul.mubr.bf16.gmra.mrb[0].mxu0 %v53
    %v195 = vpop.f32.mrb[0].mxu0
    %v196 = vadd.f32 %v112, %v195
    %v197 = vpop.f32.mrb[0].mxu0
    %v198 = vpop.f32.mrb[0].mxu0
    %v199 = vpop.f32.mrb[0].mxu0
    %200 = vdwg.mxu0
    %v201 = vmax.f32 %v196, 0.0
    %v202 = vpack.c.bf16 %v201, %v201
    %v203 = vlaneseq
    %v204 = vshrl.u32 %v203, 7
    %v205 = vsub.s32 0, %v204
    %v206 = vrot.slane %v105, %v205
    %v223 = vunpack.c.l.b16 %v71
    %v224 = vunpack.c.l.b16 %v72
    %v225 = vunpack.c.l.b16 %v73
    %v226 = vunpack.c.l.b16 %v74
    %v227 = vunpack.c.l.b16 %v75
    %v228 = vunpack.c.l.b16 %v76
    %v229 = vunpack.c.l.b16 %v77
    %v230 = vunpack.c.l.b16 %v78
    %v231 = vunpack.c.l.b16 %v79
    %v232 = vunpack.c.l.b16 %v80
    %v233 = vunpack.c.l.b16 %v81
    %v234 = vunpack.c.l.b16 %v82
    %v235 = vunpack.c.l.b16 %v83
    %v236 = vunpack.c.l.b16 %v84
    %v237 = vunpack.c.l.b16 %v85
    %v238 = vunpack.c.l.b16 %v86
    %v239 = vpack.c.b16 %v224, %v223
    %v240 = vpack.c.b16 %v226, %v225
    %v241 = vpack.c.b16 %v228, %v227
    %v242 = vpack.c.b16 %v230, %v229
    %v243 = vpack.c.b16 %v232, %v231
    %v244 = vpack.c.b16 %v234, %v233
    %v245 = vpack.c.b16 %v236, %v235
    %v246 = vpack.c.b16 %v238, %v237
    %255 = vmatprep.subr.bf16.mxu0 0
    %256 = vmatpush1.bf16.msra.mxu0 %v239
    %257 = vmatprep.subr.bf16.mxu0 0
    %258 = vmatpush1.bf16.msra.mxu0 %v240
    %259 = vmatprep.subr.bf16.mxu0 0
    %260 = vmatpush1.bf16.msra.mxu0 %v241
    %261 = vmatprep.subr.bf16.mxu0 0
    %262 = vmatpush1.bf16.msra.mxu0 %v242
    %263 = vmatprep.subr.bf16.mxu0 0
    %264 = vmatpush1.bf16.msra.mxu0 %v243
    %265 = vmatprep.subr.bf16.mxu0 0
    %266 = vmatpush1.bf16.msra.mxu0 %v244
    %267 = vmatprep.subr.bf16.mxu0 0
    %268 = vmatpush1.bf16.msra.mxu0 %v245
    %269 = vmatprep.subr.bf16.mxu0 0
    %270 = vmatpush1.bf16.msra.mxu0 %v246
    %271 = vmatprep.subr.bf16.mxu0 0
    %272 = vmatpush1.bf16.msra.mxu0 0
    %273 = vmatprep.subr.bf16.mxu0 0
    %274 = vmatpush1.bf16.msra.mxu0 0
    %275 = vmatprep.subr.bf16.mxu0 0
    %276 = vmatpush1.bf16.msra.mxu0 0
    %277 = vmatprep.subr.bf16.mxu0 0
    %278 = vmatpush1.bf16.msra.mxu0 0
    %279 = vmatprep.subr.bf16.mxu0 0
    %280 = vmatpush1.bf16.msra.mxu0 0
    %281 = vmatprep.subr.bf16.mxu0 0
    %282 = vmatpush1.bf16.msra.mxu0 0
    %283 = vmatprep.subr.bf16.mxu0 0
    %284 = vmatpush1.bf16.msra.mxu0 0
    %285 = vmatprep.subr.bf16.mxu0 0
    %286 = vmatpush1.bf16.msra.mxu0 0
    %287 = vmatprep.mubr.bf16.mxu0 0
    %288 = vmatmul.mubr.bf16.gmra.mrb[0].mxu0 %v202
    %v289 = vpop.f32.mrb[0].mxu0
    %v290 = vadd.f32 %v206, %v289
    %v291 = vpop.f32.mrb[0].mxu0
    %v292 = vpop.f32.mrb[0].mxu0
    %v293 = vpop.f32.mrb[0].mxu0
    %294 = vdwg.mxu0
    %v295 = vmax.f32 %v290, 0.0
    %v296 = vpack.c.bf16 %v295, %v295
    %v297 = vlaneseq
    %v298 = vshrl.u32 %v297, 7
    %v299 = vsub.s32 0, %v298
    %v300 = vrot.slane %v106, %v299
    %v317 = vunpack.c.l.b16 %v88
    %v318 = vunpack.c.l.b16 %v89
    %v319 = vunpack.c.l.b16 %v90
    %v320 = vunpack.c.l.b16 %v91
    %v321 = vunpack.c.l.b16 %v92
    %v322 = vunpack.c.l.b16 %v93
    %v323 = vunpack.c.l.b16 %v94
    %v324 = vunpack.c.l.b16 %v95
    %v325 = vunpack.c.l.b16 %v96
    %v326 = vunpack.c.l.b16 %v97
    %v327 = vunpack.c.l.b16 %v98
    %v328 = vunpack.c.l.b16 %v99
    %v329 = vunpack.c.l.b16 %v100
    %v330 = vunpack.c.l.b16 %v101
    %v331 = vunpack.c.l.b16 %v102
    %v332 = vunpack.c.l.b16 %v103
    %v333 = vpack.c.b16 %v318, %v317
    %v334 = vpack.c.b16 %v320, %v319
    %v335 = vpack.c.b16 %v322, %v321
    %v336 = vpack.c.b16 %v324, %v323
    %v337 = vpack.c.b16 %v326, %v325
    %v338 = vpack.c.b16 %v328, %v327
    %v339 = vpack.c.b16 %v330, %v329
    %v340 = vpack.c.b16 %v332, %v331
    %349 = vmatprep.subr.bf16.mxu0 0
    %350 = vmatpush1.bf16.msra.mxu0 %v333
    %351 = vmatprep.subr.bf16.mxu0 0
    %352 = vmatpush1.bf16.msra.mxu0 %v334
    %353 = vmatprep.subr.bf16.mxu0 0
    %354 = vmatpush1.bf16.msra.mxu0 %v335
    %355 = vmatprep.subr.bf16.mxu0 0
    %356 = vmatpush1.bf16.msra.mxu0 %v336
    %357 = vmatprep.subr.bf16.mxu0 0
    %358 = vmatpush1.bf16.msra.mxu0 %v337
    %359 = vmatprep.subr.bf16.mxu0 0
    %360 = vmatpush1.bf16.msra.mxu0 %v338
    %361 = vmatprep.subr.bf16.mxu0 0
    %362 = vmatpush1.bf16.msra.mxu0 %v339
    %363 = vmatprep.subr.bf16.mxu0 0
    %364 = vmatpush1.bf16.msra.mxu0 %v340
    %365 = vmatprep.subr.bf16.mxu0 0
    %366 = vmatpush1.bf16.msra.mxu0 0
    %367 = vmatprep.subr.bf16.mxu0 0
    %368 = vmatpush1.bf16.msra.mxu0 0
    %369 = vmatprep.subr.bf16.mxu0 0
    %370 = vmatpush1.bf16.msra.mxu0 0
    %371 = vmatprep.subr.bf16.mxu0 0
    %372 = vmatpush1.bf16.msra.mxu0 0
    %373 = vmatprep.subr.bf16.mxu0 0
    %374 = vmatpush1.bf16.msra.mxu0 0
    %375 = vmatprep.subr.bf16.mxu0 0
    %376 = vmatpush1.bf16.msra.mxu0 0
    %377 = vmatprep.subr.bf16.mxu0 0
    %378 = vmatpush1.bf16.msra.mxu0 0
    %379 = vmatprep.subr.bf16.mxu0 0
    %380 = vmatpush1.bf16.msra.mxu0 0
    %381 = vmatprep.mubr.bf16.mxu0 0
    %382 = vmatmul.mubr.bf16.gmra.mrb[0].mxu0 %v296
    %v383 = vpop.f32.mrb[0].mxu0
    %v384 = vadd.f32 %v300, %v383
    %v385 = vpop.f32.mrb[0].mxu0
    %v386 = vpop.f32.mrb[0].mxu0
    %v387 = vpop.f32.mrb[0].mxu0
    %388 = vdwg.mxu0
    %v389 = vlaneseq
    %v390 = vand.u32 %v389, 127
    %vm391 = vcmp.ge.s32.totalorder %v390, 8
    %vm392 = vcmp.lt.s32.totalorder %v390, 12
    %vm393 = vmand %vm391, %vm392
    %v394 = vtanh.pop %v384
    %v395 = vsel %vm393, 1, 0
    %vm396 = vcmp.eq.s32.totalorder %v395, 1
    %v397 = vsel %vm396, %v394, %v384
    %v398 = vunpack.c.l.bf16 %v53
    %v399 = vlaneseq
    %v400 = vshrl.u32 %v399, 7
    %v401 = vsub.s32 0, %v400
    %v402 = vrot.slane %v107, %v401
    %v403 = vmul.f32 %v402, %v398
    %v404 = vadd.f32 %v397, %v403
    %v405 = vlaneseq
    %v406 = vshrl.u32 %v405, 7
    %v407 = vsub.s32 0, %v406
    %v408 = vrot.slane %v108, %v407
    %v409 = vmul.f32 %v408, %v398
    %v410 = vmul.f32 %v409, %v398
    %411 = vadd.xlane.f32.xlu0 %v410
    %v412 = vpop.xlane.xlu0 %411
    %vm413 = vcmp.eq.s32.totalorder %v390, 12
    %v414 = vsel %vm413, 1, 0
    %vm415 = vcmp.eq.s32.totalorder %v414, 1
    %v416 = vsel %vm415, %v412, 0.0
    %v417 = vadd.f32 %v404, %v416
    %418 = vst [vmem:[#allocation8] sm:$0xff] %v417
    // Predicated region
    $region26: #{tpu_custom_call.1} parent=1 // pred_check
      _
    $region27: #{tpu_custom_call.1} parent=1 // pred_check_branch
      %420 = sbr.rel (0) target = $region29
    $region28: #{tpu_custom_call.1} parent=1 // pred_region
      %s422 = ssub.s32 128, 128
      %423 = vsyncadd [#allocation4], %s422
      %s425 = sshll.u32 [#allocation8], 4
      %s426 = int_to_ptr.vmem [resolvable:$true] %s425
      %428 = dma.vmem_to_hbm [thread:$0]  %s426, 128, %s3, [#allocation4]
    $region29: #{tpu_custom_call.1} parent=1 // pred_fallthru
      _
    // Predicated region
    $region30: #{tpu_custom_call.1} parent=1 // pred_check
      _
    $region31: #{tpu_custom_call.1} parent=1 // pred_check_branch
      %430 = sbr.rel (0) target = $region33
    $region32: #{tpu_custom_call.1} parent=1 // pred_region
      %431 = dma.done [#allocation4], 128
    $region33: #{tpu_custom_call.1} parent=1 // pred_fallthru
      _
    %432 = vsyncpa [#allocation3], 1
    %433 = vsyncpa [#allocation6], 1
    %434 = vsyncpa [#allocation4], 1

</llo_original>
